<compile_context>
chip_gen: v7x
topology: tpu7x:2x2x1
jax: 0.10.0
libtpu: 0.0.40
codegen_flags: <defaults>
</compile_context>

<pallas_src>
import functools

import jax
import jax.numpy as jnp
from jax.experimental import pallas as pl
from jax.experimental.pallas import tpu as pltpu

DIM_INNER = 32      # cfg.gnn.dim_inner
SUBLANES = 8        # vreg sublane count -> row padding multiple
BN_EPS = 1e-5


def _round_up(n, m):
    return (n + m - 1) // m * m


def _fused_encoder_kernel(xn_ref, wn_ref, xe_ref, we_ref, gb_ref,
                          on_ref, oe_ref, *, n_node, n_edge, eps):
    """Fused node+edge (Linear -> BatchNorm1d, batch statistics) encoder.

    xn_ref: [Nn_pad, Fn]   node features (rows >= n_node are zero padding)
    wn_ref: [Fn, D]        node linear weight (bias folded out, see header)
    xe_ref: [Ne_pad, Fe]   edge features
    we_ref: [Fe, D]        edge linear weight
    gb_ref: [4, D]         rows: node_gamma, node_beta, edge_gamma, edge_beta
    on_ref: [n_node, D]    node output (exact logical shape, no padding)
    oe_ref: [n_edge, D]    edge output (exact logical shape, no padding)
    """
    gb = gb_ref[...]

    def encode(x_ref, w_ref, gamma, beta, o_ref, n_true):
        # Linear (bias folded out): MXU matmul with f32 accumulation.
        h = jnp.dot(x_ref[...], w_ref[...], preferred_element_type=jnp.float32)
        # Two independent cross-sublane reductions; they overlap on the XLUs
        # while the other encoder's matmul runs on the MXU.
        ssum = jnp.sum(h, axis=0, keepdims=True)        # [1, D]
        ssq = jnp.sum(h * h, axis=0, keepdims=True)     # [1, D]
        inv_n = jnp.float32(1.0 / n_true)                # true row count, not padded
        mean = ssum * inv_n
        var = jnp.maximum(ssq * inv_n - mean * mean, 0.0)    # biased variance
        scale = gamma * jax.lax.rsqrt(var + eps)              # gamma * inv_std folded
        shift = beta - mean * scale
        # Single fused multiply-add epilogue; drop the padded row tail so the
        # HBM output is exactly [n_true, D] (no wrapper-side slice copy).
        y = h * scale + shift
        o_ref[...] = y[:n_true].astype(o_ref.dtype)

    encode(xn_ref, wn_ref, gb[0:1, :], gb[1:2, :], on_ref, n_node)
    encode(xe_ref, we_ref, gb[2:3, :], gb[3:4, :], oe_ref, n_edge)


def _pad_rows(x, multiple=SUBLANES):
    n = x.shape[0]
    n_pad = _round_up(n, multiple)
    if n_pad != n:
        x = jnp.pad(x, ((0, n_pad - n), (0, 0)))
    return x


@functools.partial(jax.jit, static_argnames=("eps",))
def fused_feature_encode(x_node, x_edge, node_w, edge_w, gammabeta, *, eps=BN_EPS):
    """Single pallas_call encoding both node and edge features.

    node_w / edge_w: [F, dim_inner] Linear weights (no bias needed: it cancels
                     under batch-statistics BatchNorm).
    gammabeta:       [4, dim_inner] fused (node_gamma, node_beta,
                     edge_gamma, edge_beta).
    Returns exact-shape outputs: node [Nn, dim_inner], edge [Ne, dim_inner].
    """
    # TODO(synk): for graphs whose features exceed VMEM, switch to a row-tiled
    # grid with per-tile partial sum / sum-of-squares and a second normalize
    # pass (GLOBAL batch statistics), instead of whole-array blocks.
    nn = x_node.shape[0]
    ne = x_edge.shape[0]
    d = node_w.shape[1]

    xn = _pad_rows(x_node)   # zero rows contribute 0 to the statistics
    xe = _pad_rows(x_edge)

    vmem = pl.BlockSpec(memory_space=pltpu.MemorySpace.VMEM)
    node_out, edge_out = pl.pallas_call(
        functools.partial(_fused_encoder_kernel, n_node=nn, n_edge=ne, eps=eps),
        out_shape=(
            jax.ShapeDtypeStruct((nn, d), jnp.float32),
            jax.ShapeDtypeStruct((ne, d), jnp.float32),
        ),
        in_specs=[vmem, vmem, vmem, vmem, vmem],
        out_specs=(vmem, vmem),
        compiler_params=pltpu.CompilerParams(vmem_limit_bytes=64 * 1024 * 1024),
    )(xn, node_w, xe, edge_w, gammabeta)
    return node_out, edge_out


class FeatureEncoderParams:
    """Parameter container mirroring FeatureEncoder.__init__ (Linear + BN x2).

    Also precomputes the kernel-ready fused gamma/beta block so that packing
    happens once at init, not on every forward.
    """

    def __init__(self, dim_in, edge_dim, dim_inner, key):
        k = jax.random.split(key, 8)
        self.dim_inner = dim_inner

        # Node encoder: Linear(dim_in -> dim_inner) + BatchNorm1d(dim_inner)
        self.node_w = (jax.random.normal(k[0], (dim_in, dim_inner), jnp.float32)
                       / jnp.sqrt(jnp.float32(dim_in)))
        self.node_b = jax.random.normal(k[1], (dim_inner,), jnp.float32) * 0.1
        # torch BN defaults are gamma=1, beta=0; perturbed here so the affine
        # path is actually exercised by the correctness check.
        self.node_gamma = 1.0 + 0.1 * jax.random.normal(k[2], (dim_inner,), jnp.float32)
        self.node_beta = 0.1 * jax.random.normal(k[3], (dim_inner,), jnp.float32)

        # Edge encoder: Linear(edge_dim -> dim_inner) + BatchNorm1d(dim_inner)
        self.edge_w = (jax.random.normal(k[4], (edge_dim, dim_inner), jnp.float32)
                       / jnp.sqrt(jnp.float32(edge_dim)))
        self.edge_b = jax.random.normal(k[5], (dim_inner,), jnp.float32) * 0.1
        self.edge_gamma = 1.0 + 0.1 * jax.random.normal(k[6], (dim_inner,), jnp.float32)
        self.edge_beta = 0.1 * jax.random.normal(k[7], (dim_inner,), jnp.float32)

        # NOTE: the Linear biases are intentionally NOT kernel inputs — they
        # cancel exactly under batch-statistics BatchNorm (they only affect
        # PyTorch's running_mean buffer, not the forward output).
        self.gammabeta = jnp.stack(
            [self.node_gamma, self.node_beta, self.edge_gamma, self.edge_beta],
            axis=0)   # [4, dim_inner]


def feature_encoder_forward(batch, params):
    """Pallas FeatureEncoder.forward: updates batch['x'] and batch['edge_attr']."""
    out = dict(batch)
    node_out, edge_out = fused_feature_encode(
        batch["x"], batch["edge_attr"],
        params.node_w, params.edge_w, params.gammabeta)
    out["x"] = node_out
    out["edge_attr"] = edge_out
    return out


def _reference_encode_bn(x, w, b, gamma, beta, eps=BN_EPS):
    """Plain-JAX reference: Linear (WITH bias) -> training-mode BatchNorm1d."""
    h = x.astype(jnp.float32) @ w + b
    mean = h.mean(axis=0, keepdims=True)
    var = ((h - mean) ** 2).mean(axis=0, keepdims=True)
    return (h - mean) / jnp.sqrt(var + eps) * gamma + beta


if __name__ == "__main__":
    key = jax.random.PRNGKey(0)
    k_x, k_e, k_p = jax.random.split(key, 3)

    # Small, module-consistent shapes; row counts deliberately NOT multiples of
    # 8 to exercise the row-padding + true-count statistics path.
    num_nodes, dim_in = 30, 16
    num_edges, edge_dim = 52, 8

    batch = {
        "x": jax.random.normal(k_x, (num_nodes, dim_in), jnp.float32),
        "edge_attr": jax.random.normal(k_e, (num_edges, edge_dim), jnp.float32),
        # edge_index is graph metadata, untouched by FeatureEncoder.
        "edge_index": jnp.zeros((2, num_edges), jnp.int32),
    }

    params = FeatureEncoderParams(dim_in, edge_dim, DIM_INNER, k_p)

    out = feature_encoder_forward(batch, params)
    jax.block_until_ready(out["x"])
    jax.block_until_ready(out["edge_attr"])

    # Reference keeps the Linear bias; the kernel drops it — outputs must match,
    # demonstrating the bias cancellation under batch-statistics BN.
    ref_x = _reference_encode_bn(
        batch["x"], params.node_w, params.node_b, params.node_gamma, params.node_beta)
    ref_e = _reference_encode_bn(
        batch["edge_attr"], params.edge_w, params.edge_b,
        params.edge_gamma, params.edge_beta)

    assert out["x"].shape == (num_nodes, DIM_INNER)
    assert out["edge_attr"].shape == (num_edges, DIM_INNER)
    assert jnp.allclose(out["x"], ref_x, atol=1e-4, rtol=1e-4)
    assert jnp.allclose(out["edge_attr"], ref_e, atol=1e-4, rtol=1e-4)

    print("KERNEL_OK")
</pallas_src>

<mosaic_0001>
module attributes {stable_mosaic.version = 11 : i64} {
  func.func @_fused_encoder_kernel(%arg0: memref<32x16xf32, #tpu.memory_space<vmem>>, %arg1: memref<16x32xf32, #tpu.memory_space<vmem>>, %arg2: memref<56x8xf32, #tpu.memory_space<vmem>>, %arg3: memref<8x32xf32, #tpu.memory_space<vmem>>, %arg4: memref<4x32xf32, #tpu.memory_space<vmem>>, %arg5: memref<30x32xf32, #tpu.memory_space<vmem>>, %arg6: memref<52x32xf32, #tpu.memory_space<vmem>>) attributes {dimension_semantics = [], scalar_prefetch = 0 : i64, scratch_operands = 0 : i64, tpu.core_type = #tpu.core_type<tc>} {
    %c0 = arith.constant 0 : index
    %c0_0 = arith.constant 0 : index
    %0 = vector.load %arg4[%c0, %c0_0] : memref<4x32xf32, #tpu.memory_space<vmem>>, vector<4x32xf32>
    %1 = vector.extract_strided_slice %0 {offsets = [0, 0], sizes = [1, 32], strides = [1, 1]} : vector<4x32xf32> to vector<1x32xf32>
    %2 = vector.extract_strided_slice %0 {offsets = [1, 0], sizes = [1, 32], strides = [1, 1]} : vector<4x32xf32> to vector<1x32xf32>
    %c0_1 = arith.constant 0 : index
    %c0_2 = arith.constant 0 : index
    %3 = vector.load %arg0[%c0_1, %c0_2] : memref<32x16xf32, #tpu.memory_space<vmem>>, vector<32x16xf32>
    %c0_3 = arith.constant 0 : index
    %c0_4 = arith.constant 0 : index
    %4 = vector.load %arg1[%c0_3, %c0_4] : memref<16x32xf32, #tpu.memory_space<vmem>>, vector<16x32xf32>
    %cst = arith.constant dense<0.000000e+00> : vector<32x32xf32>
    %5 = tpu.matmul %3, %4, %cst {dimension_numbers = #tpu.dot_dimension_numbers<[1], [0], [0], [1], [0, 0, 1, 1], [], []>} : vector<32x16xf32>, vector<16x32xf32>, vector<32x32xf32> -> vector<32x32xf32>
    %cst_5 = arith.constant dense<0.000000e+00> : vector<32xf32>
    %6 = vector.multi_reduction <add>, %5, %cst_5 [0] : vector<32x32xf32> to vector<32xf32>
    %7 = vector.shape_cast %6 : vector<32xf32> to vector<1x32xf32>
    %8 = arith.mulf %5, %5 : vector<32x32xf32>
    %cst_6 = arith.constant dense<0.000000e+00> : vector<32xf32>
    %9 = vector.multi_reduction <add>, %8, %cst_6 [0] : vector<32x32xf32> to vector<32xf32>
    %10 = vector.shape_cast %9 : vector<32xf32> to vector<1x32xf32>
    %cst_7 = arith.constant 0.0333333351 : f32
    %11 = vector.broadcast %cst_7 : f32 to vector<1x32xf32>
    %12 = arith.mulf %7, %11 : vector<1x32xf32>
    %cst_8 = arith.constant 0.0333333351 : f32
    %13 = vector.broadcast %cst_8 : f32 to vector<1x32xf32>
    %14 = arith.mulf %10, %13 : vector<1x32xf32>
    %15 = arith.mulf %12, %12 : vector<1x32xf32>
    %16 = arith.subf %14, %15 : vector<1x32xf32>
    %cst_9 = arith.constant 0.000000e+00 : f32
    %17 = vector.broadcast %cst_9 : f32 to vector<1x32xf32>
    %18 = arith.maximumf %16, %17 : vector<1x32xf32>
    %cst_10 = arith.constant 9.99999974E-6 : f32
    %19 = vector.broadcast %cst_10 : f32 to vector<1x32xf32>
    %20 = arith.addf %18, %19 : vector<1x32xf32>
    %21 = math.rsqrt %20 : vector<1x32xf32>
    %22 = arith.mulf %1, %21 : vector<1x32xf32>
    %23 = arith.mulf %12, %22 : vector<1x32xf32>
    %24 = arith.subf %2, %23 : vector<1x32xf32>
    %25 = vector.broadcast %22 : vector<1x32xf32> to vector<32x32xf32>
    %26 = arith.mulf %5, %25 : vector<32x32xf32>
    %27 = vector.broadcast %24 : vector<1x32xf32> to vector<32x32xf32>
    %28 = arith.addf %26, %27 : vector<32x32xf32>
    %29 = vector.extract_strided_slice %28 {offsets = [0, 0], sizes = [30, 32], strides = [1, 1]} : vector<32x32xf32> to vector<30x32xf32>
    %c0_11 = arith.constant 0 : index
    %c0_12 = arith.constant 0 : index
    %30 = vector.load %arg5[%c0_11, %c0_12] : memref<30x32xf32, #tpu.memory_space<vmem>>, vector<30x32xf32>
    tpu.vector_store %arg5[%c0_11, %c0_12], %29 {strides = array<i32>} : memref<30x32xf32, #tpu.memory_space<vmem>>, vector<30x32xf32>,
    %31 = vector.extract_strided_slice %0 {offsets = [2, 0], sizes = [1, 32], strides = [1, 1]} : vector<4x32xf32> to vector<1x32xf32>
    %32 = vector.extract_strided_slice %0 {offsets = [3, 0], sizes = [1, 32], strides = [1, 1]} : vector<4x32xf32> to vector<1x32xf32>
    %c0_13 = arith.constant 0 : index
    %c0_14 = arith.constant 0 : index
    %33 = vector.load %arg2[%c0_13, %c0_14] : memref<56x8xf32, #tpu.memory_space<vmem>>, vector<56x8xf32>
    %c0_15 = arith.constant 0 : index
    %c0_16 = arith.constant 0 : index
    %34 = vector.load %arg3[%c0_15, %c0_16] : memref<8x32xf32, #tpu.memory_space<vmem>>, vector<8x32xf32>
    %cst_17 = arith.constant dense<0.000000e+00> : vector<56x32xf32>
    %35 = tpu.matmul %33, %34, %cst_17 {dimension_numbers = #tpu.dot_dimension_numbers<[1], [0], [0], [1], [0, 0, 1, 1], [], []>} : vector<56x8xf32>, vector<8x32xf32>, vector<56x32xf32> -> vector<56x32xf32>
    %cst_18 = arith.constant dense<0.000000e+00> : vector<32xf32>
    %36 = vector.multi_reduction <add>, %35, %cst_18 [0] : vector<56x32xf32> to vector<32xf32>
    %37 = vector.shape_cast %36 : vector<32xf32> to vector<1x32xf32>
    %38 = arith.mulf %35, %35 : vector<56x32xf32>
    %cst_19 = arith.constant dense<0.000000e+00> : vector<32xf32>
    %39 = vector.multi_reduction <add>, %38, %cst_19 [0] : vector<56x32xf32> to vector<32xf32>
    %40 = vector.shape_cast %39 : vector<32xf32> to vector<1x32xf32>
    %cst_20 = arith.constant 0.0192307699 : f32
    %41 = vector.broadcast %cst_20 : f32 to vector<1x32xf32>
    %42 = arith.mulf %37, %41 : vector<1x32xf32>
    %cst_21 = arith.constant 0.0192307699 : f32
    %43 = vector.broadcast %cst_21 : f32 to vector<1x32xf32>
    %44 = arith.mulf %40, %43 : vector<1x32xf32>
    %45 = arith.mulf %42, %42 : vector<1x32xf32>
    %46 = arith.subf %44, %45 : vector<1x32xf32>
    %cst_22 = arith.constant 0.000000e+00 : f32
    %47 = vector.broadcast %cst_22 : f32 to vector<1x32xf32>
    %48 = arith.maximumf %46, %47 : vector<1x32xf32>
    %cst_23 = arith.constant 9.99999974E-6 : f32
    %49 = vector.broadcast %cst_23 : f32 to vector<1x32xf32>
    %50 = arith.addf %48, %49 : vector<1x32xf32>
    %51 = math.rsqrt %50 : vector<1x32xf32>
    %52 = arith.mulf %31, %51 : vector<1x32xf32>
    %53 = arith.mulf %42, %52 : vector<1x32xf32>
    %54 = arith.subf %32, %53 : vector<1x32xf32>
    %55 = vector.broadcast %52 : vector<1x32xf32> to vector<56x32xf32>
    %56 = arith.mulf %35, %55 : vector<56x32xf32>
    %57 = vector.broadcast %54 : vector<1x32xf32> to vector<56x32xf32>
    %58 = arith.addf %56, %57 : vector<56x32xf32>
    %59 = vector.extract_strided_slice %58 {offsets = [0, 0], sizes = [52, 32], strides = [1, 1]} : vector<56x32xf32> to vector<52x32xf32>
    %c0_24 = arith.constant 0 : index
    %c0_25 = arith.constant 0 : index
    %60 = vector.load %arg6[%c0_24, %c0_25] : memref<52x32xf32, #tpu.memory_space<vmem>>, vector<52x32xf32>
    tpu.vector_store %arg6[%c0_24, %c0_25], %59 {strides = array<i32>} : memref<52x32xf32, #tpu.memory_space<vmem>>, vector<52x32xf32>,
    return
  }
}

</mosaic_0001>

<llo_original>
// kernel: fused_feature_encode.1
$region0: #{fused_feature_encode.1}
  #allocation0 [shape = 'u32[]', space=smem, size = 0x4, offset = 0x4, fixed_abs, tag = 'smem constant byte address 0x4 - core index']
  #allocation1 [shape = 'u32[144,128]{1,0:T(1,128)}', space=vmem, size = 0x12000, scoped, tag = 'internal scratch']
  %s0 = inlined_call_operand.hbm [shape: f32[32,16], index: 0, kind: input, shape index: {}]
  %s1 = inlined_call_operand.hbm [shape: f32[16,32], index: 1, kind: input, shape index: {}]
  %s2 = inlined_call_operand.hbm [shape: f32[56,8], index: 2, kind: input, shape index: {}]
  %s3 = inlined_call_operand.hbm [shape: f32[8,32], index: 3, kind: input, shape index: {}]
  %s4 = inlined_call_operand.hbm [shape: f32[4,32], index: 4, kind: input, shape index: {}]
  %s5 = inlined_call_operand.hbm [shape: f32[30,32], index: 5, kind: output, shape index: {0}]
  %s6 = inlined_call_operand.hbm [shape: f32[52,32], index: 6, kind: output, shape index: {1}]
  %7 = xla_tuple %s5, %s6
  %s8 = sld [smem:[#allocation0]]
  $region58: #{fused_feature_encode.1} parent=0
    _
  %s10 = ssub.s32 1, %s8
  %s11 = scalar_select 0, %s10, %s8
  $region1: #{fused_feature_encode.1} parent=0
    #allocation2 [shape = 'u8[16384]{0}', space=vmem, size = 0x4000, scoped, tag = 'input window, operand 0, single buffered']
    #allocation3 [shape = 's32[1]{0}', space=sflag, size = 0x4, scoped, tag = 'scoped memory for fused_feature_encode.1']
    #allocation4 [shape = 's32[1]{0}', space=sflag, size = 0x4, scoped, tag = 'scoped memory for fused_feature_encode.1']
    #allocation5 [shape = 'u8[8192]{0}', space=vmem, size = 0x2000, scoped, tag = 'input window, operand 1, single buffered']
    #allocation6 [shape = 's32[1]{0}', space=sflag, size = 0x4, scoped, tag = 'scoped memory for fused_feature_encode.1']
    #allocation7 [shape = 'u8[28672]{0}', space=vmem, size = 0x7000, scoped, tag = 'input window, operand 2, single buffered']
    #allocation8 [shape = 'u8[4096]{0}', space=vmem, size = 0x1000, scoped, tag = 'input window, operand 3, single buffered']
    #allocation9 [shape = 's32[1]{0}', space=sflag, size = 0x4, scoped, tag = 'scoped memory for fused_feature_encode.1']
    #allocation10 [shape = 'u8[2048]{0}', space=vmem, size = 0x800, scoped, tag = 'input window, operand 4, single buffered']
    #allocation11 [shape = 'u8[16384]{0}', space=vmem, size = 0x4000, scoped, tag = 'output window, operand 0, single buffered']
    #allocation12 [shape = 'u8[28672]{0}', space=vmem, size = 0x7000, scoped, tag = 'output window, operand 1, single buffered']
    #allocation13 [shape = 's32[1]{0}', space=sflag, size = 0x4, scoped, tag = 'scoped memory for fused_feature_encode.1']
    %12 = vsyncpa [#allocation3], 0
    %13 = vsyncpa [#allocation6], 0
    %14 = vsyncpa [#allocation9], 0
    %15 = vsyncpa [#allocation4], 0
    %16 = vsyncpa [#allocation13], 0
    // Predicated region
    $region2: #{fused_feature_encode.1} parent=1 // pred_check
      _
    $region3: #{fused_feature_encode.1} parent=1 // pred_check_branch
      %18 = sbr.rel (0) target = $region5
    $region4: #{fused_feature_encode.1} parent=1 // pred_region
      %s20 = ssub.s32 512, 512
      %21 = vsyncadd [#allocation3], %s20
      %s22 = sshll.u32 [#allocation2], 4
      %s23 = int_to_ptr.vmem [resolvable:$true] %s22
      %28 = dma.hbm_to_vmem [thread:$0]  %s0, 512, %s23, [#allocation3], 128, 128, 8
    $region5: #{fused_feature_encode.1} parent=1 // pred_fallthru
      _
    // Predicated region
    $region6: #{fused_feature_encode.1} parent=1 // pred_check
      _
    $region7: #{fused_feature_encode.1} parent=1 // pred_check_branch
      %30 = sbr.rel (0) target = $region9
    $region8: #{fused_feature_encode.1} parent=1 // pred_region
      %s32 = ssub.s32 256, 256
      %33 = vsyncadd [#allocation6], %s32
      %s34 = sshll.u32 [#allocation5], 4
      %s35 = int_to_ptr.vmem [resolvable:$true] %s34
      %40 = dma.hbm_to_vmem [thread:$0]  %s1, 256, %s35, [#allocation6], 128, 128, 8
    $region9: #{fused_feature_encode.1} parent=1 // pred_fallthru
      _
    // Predicated region
    $region10: #{fused_feature_encode.1} parent=1 // pred_check
      _
    $region11: #{fused_feature_encode.1} parent=1 // pred_check_branch
      %42 = sbr.rel (0) target = $region13
    $region12: #{fused_feature_encode.1} parent=1 // pred_region
      %s44 = ssub.s32 896, 896
      %45 = vsyncadd [#allocation6], %s44
      %s46 = sshll.u32 [#allocation7], 4
      %s47 = int_to_ptr.vmem [resolvable:$true] %s46
      %52 = dma.hbm_to_vmem [thread:$0]  %s2, 896, %s47, [#allocation6], 128, 128, 8
    $region13: #{fused_feature_encode.1} parent=1 // pred_fallthru
      _
    // Predicated region
    $region14: #{fused_feature_encode.1} parent=1 // pred_check
      _
    $region15: #{fused_feature_encode.1} parent=1 // pred_check_branch
      %54 = sbr.rel (0) target = $region17
    $region16: #{fused_feature_encode.1} parent=1 // pred_region
      %s56 = ssub.s32 128, 128
      %57 = vsyncadd [#allocation9], %s56
      %s59 = sshll.u32 [#allocation8], 4
      %s60 = int_to_ptr.vmem [resolvable:$true] %s59
      %62 = dma.hbm_to_vmem [thread:$0]  %s3, 128, %s60, [#allocation9]
    $region17: #{fused_feature_encode.1} parent=1 // pred_fallthru
      _
    // Predicated region
    $region18: #{fused_feature_encode.1} parent=1 // pred_check
      _
    $region19: #{fused_feature_encode.1} parent=1 // pred_check_branch
      %64 = sbr.rel (0) target = $region21
    $region20: #{fused_feature_encode.1} parent=1 // pred_region
      %s66 = ssub.s32 64, 64
      %67 = vsyncadd [#allocation9], %s66
      %s69 = sshll.u32 [#allocation10], 4
      %s70 = int_to_ptr.vmem [resolvable:$true] %s69
      %72 = dma.hbm_to_vmem [thread:$0]  %s4, 64, %s70, [#allocation9]
    $region21: #{fused_feature_encode.1} parent=1 // pred_fallthru
      _
    // Predicated region
    $region22: #{fused_feature_encode.1} parent=1 // pred_check
      _
    $region23: #{fused_feature_encode.1} parent=1 // pred_check_branch
      %74 = sbr.rel (0) target = $region25
    $region24: #{fused_feature_encode.1} parent=1 // pred_region
      %75 = dma.done [#allocation3], 512
    $region25: #{fused_feature_encode.1} parent=1 // pred_fallthru
      _
    // Predicated region
    $region26: #{fused_feature_encode.1} parent=1 // pred_check
      _
    $region27: #{fused_feature_encode.1} parent=1 // pred_check_branch
      %77 = sbr.rel (0) target = $region29
    $region28: #{fused_feature_encode.1} parent=1 // pred_region
      %78 = dma.done [#allocation6], 256
    $region29: #{fused_feature_encode.1} parent=1 // pred_fallthru
      _
    // Predicated region
    $region30: #{fused_feature_encode.1} parent=1 // pred_check
      _
    $region31: #{fused_feature_encode.1} parent=1 // pred_check_branch
      %80 = sbr.rel (0) target = $region33
    $region32: #{fused_feature_encode.1} parent=1 // pred_region
      %81 = dma.done [#allocation6], 896
    $region33: #{fused_feature_encode.1} parent=1 // pred_fallthru
      _
    // Predicated region
    $region34: #{fused_feature_encode.1} parent=1 // pred_check
      _
    $region35: #{fused_feature_encode.1} parent=1 // pred_check_branch
      %83 = sbr.rel (0) target = $region37
    $region36: #{fused_feature_encode.1} parent=1 // pred_region
      %84 = dma.done [#allocation9], 128
    $region37: #{fused_feature_encode.1} parent=1 // pred_fallthru
      _
    // Predicated region
    $region38: #{fused_feature_encode.1} parent=1 // pred_check
      _
    $region39: #{fused_feature_encode.1} parent=1 // pred_check_branch
      %86 = sbr.rel (0) target = $region41
    $region40: #{fused_feature_encode.1} parent=1 // pred_region
      %87 = dma.done [#allocation9], 64
    $region41: #{fused_feature_encode.1} parent=1 // pred_fallthru
      _
    %v88 = vld [vmem:[#allocation10] sm:$0xf]
    %v89 = vld [vmem:[#allocation2] sm:$0xff]
    %v90 = vld [vmem:[#allocation2 + $0x8] sm:$0xff]
    %v91 = vld [vmem:[#allocation2 + $0x10] sm:$0xff]
    %v92 = vld [vmem:[#allocation2 + $0x18] sm:$0xff]
    %v93 = vld [vmem:[#allocation5] sm:$0xff]
    %v94 = vld [vmem:[#allocation5 + $0x8] sm:$0xff]
    %vm95 = vcmask 130048
    %v97 = vsel %vm95, %v89, 0
    %v100 = vsel %vm95, %v90, 0
    %v103 = vsel %vm95, %v91, 0
    %v106 = vsel %vm95, %v92, 0
    %108 = vmatprep.subr.mxu0 0.0
    %109 = vmatpush1.msra.mxu0 %v93
    %110 = vmatprep.subr.mxu0 0.0
    %111 = vmatpush1.msra.mxu0 %v94
    %112 = vmatprep.subr.mxu0 0.0
    %113 = vmatpush1.msra.mxu0 0.0
    %114 = vmatprep.subr.mxu0 0.0
    %115 = vmatpush1.msra.mxu0 0.0
    %116 = vmatprep.subr.mxu0 0.0
    %117 = vmatpush1.msra.mxu0 0.0
    %118 = vmatprep.subr.mxu0 0.0
    %119 = vmatpush1.msra.mxu0 0.0
    %120 = vmatprep.subr.mxu0 0.0
    %121 = vmatpush1.msra.mxu0 0.0
    %122 = vmatprep.subr.mxu0 0.0
    %123 = vmatpush1.msra.mxu0 0.0
    %124 = vmatprep.subr.mxu0 0.0
    %125 = vmatpush1.msra.mxu0 0.0
    %126 = vmatprep.subr.mxu0 0.0
    %127 = vmatpush1.msra.mxu0 0.0
    %128 = vmatprep.subr.mxu0 0.0
    %129 = vmatpush1.msra.mxu0 0.0
    %130 = vmatprep.subr.mxu0 0.0
    %131 = vmatpush1.msra.mxu0 0.0
    %132 = vmatprep.subr.mxu0 0.0
    %133 = vmatpush1.msra.mxu0 0.0
    %134 = vmatprep.subr.mxu0 0.0
    %135 = vmatpush1.msra.mxu0 0.0
    %136 = vmatprep.subr.mxu0 0.0
    %137 = vmatpush1.msra.mxu0 0.0
    %138 = vmatprep.subr.mxu0 0.0
    %139 = vmatpush1.msra.mxu0 0.0
    %140 = vmatprep.subr.mxu0 0.0
    %141 = vmatpush1.msra.mxu0 0.0
    %142 = vmatprep.subr.mxu0 0.0
    %143 = vmatpush1.msra.mxu0 0.0
    %144 = vmatprep.subr.mxu0 0.0
    %145 = vmatpush1.msra.mxu0 0.0
    %146 = vmatprep.subr.mxu0 0.0
    %147 = vmatpush1.msra.mxu0 0.0
    %148 = vmatprep.subr.mxu0 0.0
    %149 = vmatpush1.msra.mxu0 0.0
    %150 = vmatprep.subr.mxu0 0.0
    %151 = vmatpush1.msra.mxu0 0.0
    %152 = vmatprep.subr.mxu0 0.0
    %153 = vmatpush1.msra.mxu0 0.0
    %154 = vmatprep.subr.mxu0 0.0
    %155 = vmatpush1.msra.mxu0 0.0
    %156 = vmatprep.subr.mxu0 0.0
    %157 = vmatpush1.msra.mxu0 0.0
    %158 = vmatprep.subr.mxu0 0.0
    %159 = vmatpush1.msra.mxu0 0.0
    %160 = vmatprep.subr.mxu0 0.0
    %161 = vmatpush1.msra.mxu0 0.0
    %162 = vmatprep.subr.mxu0 0.0
    %163 = vmatpush1.msra.mxu0 0.0
    %164 = vmatprep.subr.mxu0 0.0
    %165 = vmatpush1.msra.mxu0 0.0
    %166 = vmatprep.subr.mxu0 0.0
    %167 = vmatpush1.msra.mxu0 0.0
    %168 = vmatprep.subr.mxu0 0.0
    %169 = vmatpush1.msra.mxu0 0.0
    %170 = vmatprep.subr.mxu0 0.0
    %171 = vmatpush1.msra.mxu0 0.0
    %172 = vmatprep.mubr.f32.mxu0 0.0
    %173 = vmatmul.mubr.f32.gmra.mrb[0].mxu0 %v97
    %v174 = vpop.f32.mrb[0].mxu0
    %v175 = vadd.f32 0.0, %v174
    %v176 = vpop.f32.mrb[0].mxu0
    %177 = vmatprep.mubr.f32.mxu0 0.0
    %178 = vmatmul.mubr.f32.gmra.mrb[0].mxu0 %v100
    %v179 = vpop.f32.mrb[0].mxu0
    %v180 = vadd.f32 0.0, %v179
    %v181 = vpop.f32.mrb[0].mxu0
    %182 = vmatprep.mubr.f32.mxu0 0.0
    %183 = vmatmul.mubr.f32.gmra.mrb[0].mxu0 %v103
    %v184 = vpop.f32.mrb[0].mxu0
    %v185 = vadd.f32 0.0, %v184
    %v186 = vpop.f32.mrb[0].mxu0
    %187 = vmatprep.mubr.f32.mxu0 0.0
    %188 = vmatmul.mubr.f32.gmra.mrb[0].mxu0 %v106
    %v189 = vpop.f32.mrb[0].mxu0
    %v190 = vadd.f32 0.0, %v189
    %v191 = vpop.f32.mrb[0].mxu0
    %192 = vdwg.mxu0
    %vm193 = vcmask 261120
    %v194 = vsel %vm193, %v175, 0.0
    %v195 = vsel %vm193, %v180, 0.0
    %v196 = vadd.f32 %v194, %v195
    %v197 = vsel %vm193, %v185, 0.0
    %v198 = vadd.f32 %v196, %v197
    %v199 = vsel %vm193, %v190, 0.0
    %v200 = vadd.f32 %v198, %v199
    %v201 = vrot.slane %v200, 4
    %v202 = vadd.f32 %v200, %v201
    %v203 = vrot.slane %v202, 2
    %v204 = vadd.f32 %v202, %v203
    %v205 = vrot.slane %v204, 1
    %v206 = vadd.f32 %v204, %v205
    %v207 = vmul.f32 %v175, %v175
    %v208 = vmul.f32 %v180, %v180
    %v209 = vmul.f32 %v185, %v185
    %v210 = vmul.f32 %v190, %v190
    %v211 = vsel %vm193, %v207, 0.0
    %v212 = vsel %vm193, %v208, 0.0
    %v213 = vadd.f32 %v211, %v212
    %v214 = vsel %vm193, %v209, 0.0
    %v215 = vadd.f32 %v213, %v214
    %v216 = vsel %vm193, %v210, 0.0
    %v217 = vadd.f32 %v215, %v216
    %v218 = vrot.slane %v217, 4
    %v219 = vadd.f32 %v217, %v218
    %v220 = vrot.slane %v219, 2
    %v221 = vadd.f32 %v219, %v220
    %v222 = vrot.slane %v221, 1
    %v223 = vadd.f32 %v221, %v222
    %v224 = vmul.f32 %v206, 0.033333335
    %v225 = vmul.f32 %v223, 0.033333335
    %v226 = vmul.f32 %v224, %v224
    %v227 = vsub.f32 %v225, %v226
    %v228 = vmax.f32 %v227, 0.0
    %v229 = vadd.f32 %v228, 1e-05
    %v230 = vrsqrt.pop %v229
    %v231 = vmul.f32 %v88, %v230
    %v232 = vmul.f32 %v224, %v231
    %v234 = vrot.slane %v232, 7
    %v236 = vsub.f32 %v88, %v234
    %v237 = vlaneseq
    %v238 = vshrl.u32 %v237, 7
    %v239 = vsub.s32 0, %v238
    %v240 = vrot.slane %v231, %v239
    %v241 = vmul.f32 %v175, %v240
    %v242 = vmul.f32 %v180, %v240
    %v243 = vmul.f32 %v185, %v240
    %v244 = vmul.f32 %v190, %v240
    %v245 = vlaneseq
    %v246 = vshrl.u32 %v245, 7
    %v247 = vsub.s32 1, %v246
    %v248 = vrot.slane %v236, %v247
    %v249 = vadd.f32 %v241, %v248
    %v250 = vadd.f32 %v242, %v248
    %v251 = vadd.f32 %v243, %v248
    %v252 = vadd.f32 %v244, %v248
    %253 = vst.msk [vmem:[#allocation11] sm:$0xff] %vm193, %v249
    %254 = vst.msk [vmem:[#allocation11 + $0x8] sm:$0xff] %vm193, %v250
    %255 = vst.msk [vmem:[#allocation11 + $0x10] sm:$0xff] %vm193, %v251
    %vm256 = vcmask 259072
    %257 = vst.msk [vmem:[#allocation11 + $0x18] sm:$0x3f] %vm256, %v252
    %v258 = vld [vmem:[#allocation7] sm:$0xff]
    %v259 = vld [vmem:[#allocation7 + $0x8] sm:$0xff]
    %v260 = vld [vmem:[#allocation7 + $0x10] sm:$0xff]
    %v261 = vld [vmem:[#allocation7 + $0x18] sm:$0xff]
    %v262 = vld [vmem:[#allocation7 + $0x20] sm:$0xff]
    %v263 = vld [vmem:[#allocation7 + $0x28] sm:$0xff]
    %v264 = vld [vmem:[#allocation7 + $0x30] sm:$0xff]
    %v265 = vld [vmem:[#allocation8] sm:$0xff]
    %vm266 = vcmask 64512
    %v268 = vsel %vm266, %v258, 0
    %v271 = vsel %vm266, %v259, 0
    %v274 = vsel %vm266, %v260, 0
    %v277 = vsel %vm266, %v261, 0
    %v280 = vsel %vm266, %v262, 0
    %v283 = vsel %vm266, %v263, 0
    %v286 = vsel %vm266, %v264, 0
    %288 = vmatprep.subr.mxu0 0.0
    %289 = vmatpush1.msra.mxu0 %v265
    %290 = vmatprep.subr.mxu0 0.0
    %291 = vmatpush1.msra.mxu0 0.0
    %292 = vmatprep.subr.mxu0 0.0
    %293 = vmatpush1.msra.mxu0 0.0
    %294 = vmatprep.subr.mxu0 0.0
    %295 = vmatpush1.msra.mxu0 0.0
    %296 = vmatprep.subr.mxu0 0.0
    %297 = vmatpush1.msra.mxu0 0.0
    %298 = vmatprep.subr.mxu0 0.0
    %299 = vmatpush1.msra.mxu0 0.0
    %300 = vmatprep.subr.mxu0 0.0
    %301 = vmatpush1.msra.mxu0 0.0
    %302 = vmatprep.subr.mxu0 0.0
    %303 = vmatpush1.msra.mxu0 0.0
    %304 = vmatprep.subr.mxu0 0.0
    %305 = vmatpush1.msra.mxu0 0.0
    %306 = vmatprep.subr.mxu0 0.0
    %307 = vmatpush1.msra.mxu0 0.0
    %308 = vmatprep.subr.mxu0 0.0
    %309 = vmatpush1.msra.mxu0 0.0
    %310 = vmatprep.subr.mxu0 0.0
    %311 = vmatpush1.msra.mxu0 0.0
    %312 = vmatprep.subr.mxu0 0.0
    %313 = vmatpush1.msra.mxu0 0.0
    %314 = vmatprep.subr.mxu0 0.0
    %315 = vmatpush1.msra.mxu0 0.0
    %316 = vmatprep.subr.mxu0 0.0
    %317 = vmatpush1.msra.mxu0 0.0
    %318 = vmatprep.subr.mxu0 0.0
    %319 = vmatpush1.msra.mxu0 0.0
    %320 = vmatprep.subr.mxu0 0.0
    %321 = vmatpush1.msra.mxu0 0.0
    %322 = vmatprep.subr.mxu0 0.0
    %323 = vmatpush1.msra.mxu0 0.0
    %324 = vmatprep.subr.mxu0 0.0
    %325 = vmatpush1.msra.mxu0 0.0
    %326 = vmatprep.subr.mxu0 0.0
    %327 = vmatpush1.msra.mxu0 0.0
    %328 = vmatprep.subr.mxu0 0.0
    %329 = vmatpush1.msra.mxu0 0.0
    %330 = vmatprep.subr.mxu0 0.0
    %331 = vmatpush1.msra.mxu0 0.0
    %332 = vmatprep.subr.mxu0 0.0
    %333 = vmatpush1.msra.mxu0 0.0
    %334 = vmatprep.subr.mxu0 0.0
    %335 = vmatpush1.msra.mxu0 0.0
    %336 = vmatprep.subr.mxu0 0.0
    %337 = vmatpush1.msra.mxu0 0.0
    %338 = vmatprep.subr.mxu0 0.0
    %339 = vmatpush1.msra.mxu0 0.0
    %340 = vmatprep.subr.mxu0 0.0
    %341 = vmatpush1.msra.mxu0 0.0
    %342 = vmatprep.subr.mxu0 0.0
    %343 = vmatpush1.msra.mxu0 0.0
    %344 = vmatprep.subr.mxu0 0.0
    %345 = vmatpush1.msra.mxu0 0.0
    %346 = vmatprep.subr.mxu0 0.0
    %347 = vmatpush1.msra.mxu0 0.0
    %348 = vmatprep.subr.mxu0 0.0
    %349 = vmatpush1.msra.mxu0 0.0
    %350 = vmatprep.subr.mxu0 0.0
    %351 = vmatpush1.msra.mxu0 0.0
    %352 = vmatprep.mubr.f32.mxu0 0.0
    %353 = vmatmul.mubr.f32.gmra.mrb[0].mxu0 %v268
    %v354 = vpop.f32.mrb[0].mxu0
    %v355 = vadd.f32 0.0, %v354
    %v356 = vpop.f32.mrb[0].mxu0
    %357 = vmatprep.mubr.f32.mxu0 0.0
    %358 = vmatmul.mubr.f32.gmra.mrb[0].mxu0 %v271
    %v359 = vpop.f32.mrb[0].mxu0
    %v360 = vadd.f32 0.0, %v359
    %v361 = vpop.f32.mrb[0].mxu0
    %362 = vmatprep.mubr.f32.mxu0 0.0
    %363 = vmatmul.mubr.f32.gmra.mrb[0].mxu0 %v274
    %v364 = vpop.f32.mrb[0].mxu0
    %v365 = vadd.f32 0.0, %v364
    %v366 = vpop.f32.mrb[0].mxu0
    %367 = vmatprep.mubr.f32.mxu0 0.0
    %368 = vmatmul.mubr.f32.gmra.mrb[0].mxu0 %v277
    %v369 = vpop.f32.mrb[0].mxu0
    %v370 = vadd.f32 0.0, %v369
    %v371 = vpop.f32.mrb[0].mxu0
    %372 = vmatprep.mubr.f32.mxu0 0.0
    %373 = vmatmul.mubr.f32.gmra.mrb[0].mxu0 %v280
    %v374 = vpop.f32.mrb[0].mxu0
    %v375 = vadd.f32 0.0, %v374
    %v376 = vpop.f32.mrb[0].mxu0
    %377 = vmatprep.mubr.f32.mxu0 0.0
    %378 = vmatmul.mubr.f32.gmra.mrb[0].mxu0 %v283
    %v379 = vpop.f32.mrb[0].mxu0
    %v380 = vadd.f32 0.0, %v379
    %v381 = vpop.f32.mrb[0].mxu0
    %382 = vmatprep.mubr.f32.mxu0 0.0
    %383 = vmatmul.mubr.f32.gmra.mrb[0].mxu0 %v286
    %v384 = vpop.f32.mrb[0].mxu0
    %v385 = vadd.f32 0.0, %v384
    %v386 = vpop.f32.mrb[0].mxu0
    %387 = vdwg.mxu0
    %v388 = vsel %vm193, %v355, 0.0
    %v389 = vsel %vm193, %v360, 0.0
    %v390 = vadd.f32 %v388, %v389
    %v391 = vsel %vm193, %v365, 0.0
    %v392 = vadd.f32 %v390, %v391
    %v393 = vsel %vm193, %v370, 0.0
    %v394 = vadd.f32 %v392, %v393
    %v395 = vsel %vm193, %v375, 0.0
    %v396 = vadd.f32 %v394, %v395
    %v397 = vsel %vm193, %v380, 0.0
    %v398 = vadd.f32 %v396, %v397
    %v399 = vsel %vm193, %v385, 0.0
    %v400 = vadd.f32 %v398, %v399
    %v401 = vrot.slane %v400, 4
    %v402 = vadd.f32 %v400, %v401
    %v403 = vrot.slane %v402, 2
    %v404 = vadd.f32 %v402, %v403
    %v405 = vrot.slane %v404, 1
    %v406 = vadd.f32 %v404, %v405
    %v407 = vmul.f32 %v355, %v355
    %v408 = vmul.f32 %v360, %v360
    %v409 = vmul.f32 %v365, %v365
    %v410 = vmul.f32 %v370, %v370
    %v411 = vmul.f32 %v375, %v375
    %v412 = vmul.f32 %v380, %v380
    %v413 = vmul.f32 %v385, %v385
    %v414 = vsel %vm193, %v407, 0.0
    %v415 = vsel %vm193, %v408, 0.0
    %v416 = vadd.f32 %v414, %v415
    %v417 = vsel %vm193, %v409, 0.0
    %v418 = vadd.f32 %v416, %v417
    %v419 = vsel %vm193, %v410, 0.0
    %v420 = vadd.f32 %v418, %v419
    %v421 = vsel %vm193, %v411, 0.0
    %v422 = vadd.f32 %v420, %v421
    %v423 = vsel %vm193, %v412, 0.0
    %v424 = vadd.f32 %v422, %v423
    %v425 = vsel %vm193, %v413, 0.0
    %v426 = vadd.f32 %v424, %v425
    %v427 = vrot.slane %v426, 4
    %v428 = vadd.f32 %v426, %v427
    %v429 = vrot.slane %v428, 2
    %v430 = vadd.f32 %v428, %v429
    %v431 = vrot.slane %v430, 1
    %v432 = vadd.f32 %v430, %v431
    %v433 = vmul.f32 %v406, 0.01923077
    %v434 = vmul.f32 %v432, 0.01923077
    %v435 = vmul.f32 %v433, %v433
    %v436 = vsub.f32 %v434, %v435
    %v437 = vmax.f32 %v436, 0.0
    %v438 = vadd.f32 %v437, 1e-05
    %v439 = vrsqrt.pop %v438
    %v440 = vmul.f32 %v88, %v439
    %v441 = vmul.f32 %v433, %v440
    %v443 = vrot.slane %v441, 7
    %v445 = vsub.f32 %v88, %v443
    %v446 = vlaneseq
    %v447 = vshrl.u32 %v446, 7
    %v448 = vsub.s32 2, %v447
    %v449 = vrot.slane %v440, %v448
    %v450 = vmul.f32 %v355, %v449
    %v451 = vmul.f32 %v360, %v449
    %v452 = vmul.f32 %v365, %v449
    %v453 = vmul.f32 %v370, %v449
    %v454 = vmul.f32 %v375, %v449
    %v455 = vmul.f32 %v380, %v449
    %v456 = vmul.f32 %v385, %v449
    %v457 = vlaneseq
    %v458 = vshrl.u32 %v457, 7
    %v459 = vsub.s32 3, %v458
    %v460 = vrot.slane %v445, %v459
    %v461 = vadd.f32 %v450, %v460
    %v462 = vadd.f32 %v451, %v460
    %v463 = vadd.f32 %v452, %v460
    %v464 = vadd.f32 %v453, %v460
    %v465 = vadd.f32 %v454, %v460
    %v466 = vadd.f32 %v455, %v460
    %v467 = vadd.f32 %v456, %v460
    %468 = vst.msk [vmem:[#allocation12] sm:$0xff] %vm193, %v461
    %469 = vst.msk [vmem:[#allocation12 + $0x8] sm:$0xff] %vm193, %v462
    %470 = vst.msk [vmem:[#allocation12 + $0x10] sm:$0xff] %vm193, %v463
    %471 = vst.msk [vmem:[#allocation12 + $0x18] sm:$0xff] %vm193, %v464
    %472 = vst.msk [vmem:[#allocation12 + $0x20] sm:$0xff] %vm193, %v465
    %473 = vst.msk [vmem:[#allocation12 + $0x28] sm:$0xff] %vm193, %v466
    %vm474 = vcmask 257024
    %475 = vst.msk [vmem:[#allocation12 + $0x30] sm:$0xf] %vm474, %v467
    // Predicated region
    $region42: #{fused_feature_encode.1} parent=1 // pred_check
      _
    $region43: #{fused_feature_encode.1} parent=1 // pred_check_branch
      %477 = sbr.rel (0) target = $region45
    $region44: #{fused_feature_encode.1} parent=1 // pred_region
      %s479 = ssub.s32 512, 512
      %480 = vsyncadd [#allocation4], %s479
      %s481 = sshll.u32 [#allocation11], 4
      %s482 = int_to_ptr.vmem [resolvable:$true] %s481
      %487 = dma.vmem_to_hbm [thread:$0]  %s482, 512, %s5, [#allocation4], 128, 128, 8
    $region45: #{fused_feature_encode.1} parent=1 // pred_fallthru
      _
    // Predicated region
    $region46: #{fused_feature_encode.1} parent=1 // pred_check
      _
    $region47: #{fused_feature_encode.1} parent=1 // pred_check_branch
      %489 = sbr.rel (0) target = $region49
    $region48: #{fused_feature_encode.1} parent=1 // pred_region
      %s491 = ssub.s32 896, 896
      %492 = vsyncadd [#allocation13], %s491
      %s493 = sshll.u32 [#allocation12], 4
      %s494 = int_to_ptr.vmem [resolvable:$true] %s493
      %499 = dma.vmem_to_hbm [thread:$0]  %s494, 896, %s6, [#allocation13], 128, 128, 8
    $region49: #{fused_feature_encode.1} parent=1 // pred_fallthru
      _
    // Predicated region
    $region50: #{fused_feature_encode.1} parent=1 // pred_check
      _
    $region51: #{fused_feature_encode.1} parent=1 // pred_check_branch
      %501 = sbr.rel (0) target = $region53
    $region52: #{fused_feature_encode.1} parent=1 // pred_region
      %502 = dma.done [#allocation4], 512
    $region53: #{fused_feature_encode.1} parent=1 // pred_fallthru
      _
    // Predicated region
    $region54: #{fused_feature_encode.1} parent=1 // pred_check
      _
    $region55: #{fused_feature_encode.1} parent=1 // pred_check_branch
      %504 = sbr.rel (0) target = $region57
    $region56: #{fused_feature_encode.1} parent=1 // pred_region
      %505 = dma.done [#allocation13], 896
    $region57: #{fused_feature_encode.1} parent=1 // pred_fallthru
      _
    %506 = vsyncpa [#allocation3], 1
    %507 = vsyncpa [#allocation6], 1
    %508 = vsyncpa [#allocation9], 1
    %509 = vsyncpa [#allocation4], 1
    %510 = vsyncpa [#allocation13], 1

</llo_original>
